<compile_context>
chip_gen: v5e
topology: v5e:2x2
jax: 0.10.0
libtpu: 0.0.40
codegen_flags: <defaults>
</compile_context>

<pallas_src>
import functools

import jax
import jax.numpy as jnp
from jax.experimental import pallas as pl
from jax.experimental.pallas import tpu as pltpu

_LANE = 128
_CHUNK_ROWS = 1024        # in-kernel processing chunk (bounds f32 temporaries)


def _round_up(a, b):
    return (a + b - 1) // b * b


def _device_kind():
    try:
        return jax.devices()[0].device_kind.lower()
    except Exception:
        return ""


def _chip_config():
    """(bytes per input per pipeline buffer, number of TensorCores)."""
    kind = _device_kind()
    is_v5e = ("v5 lite" in kind) or ("v5e" in kind) or ("v5lite" in kind)
    is_v7 = "v7" in kind
    bytes_per_buffer = (2 << 20) if is_v5e else (4 << 20)
    num_tensorcores = 2 if is_v7 else 1      # v5e / v6e are single-TC
    return bytes_per_buffer, num_tensorcores


def _dice_bce_partial_kernel(x_ref, t_ref, acc_ref, *, rows, block_rows,
                             chunk_rows, blocks_per_part, needs_mask):
    """Accumulates 4 per-lane partial sums into a resident (1,4,8,128) block.

    Channels: 0 = sum(x*t), 1 = sum(x), 2 = sum(t), 3 = sum(BCE terms).
    """
    c = pl.program_id(0)     # parallel part (separate TensorCore on v7x)
    i = pl.program_id(1)     # reduction step within this part

    @pl.when(i == 0)
    def _init():
        acc_ref[...] = jnp.zeros_like(acc_ref)

    def fold(v):
        # (chunk_rows, 128) -> (8, 128): pure VPU vreg adds, no XLU work.
        return jnp.sum(v.reshape(-1, 8, _LANE), axis=0)

    def accumulate(x, t):
        # x, t are float32 and already masked (when needed) BEFORE the logs,
        # so garbage / NaN in OOB rows never reaches the folds.
        log_x = jnp.maximum(jnp.log(x), -100.0)          # PyTorch clamps at -100
        log_1mx = jnp.maximum(jnp.log(1.0 - x), -100.0)
        acc_ref[0, 0] += fold(x * t)
        acc_ref[0, 1] += fold(x)
        acc_ref[0, 2] += fold(t)
        # bce = -(t*log_x + (1-t)*log_1mx) = -(t*(log_x - log_1mx) + log_1mx)
        acc_ref[0, 3] -= fold(t * (log_x - log_1mx) + log_1mx)
        # TODO(synk): if targets are guaranteed binary, a single-log form
        # (sel = where(t > 0.5, x, 1 - x)) would halve EUP log traffic.

    n_chunks = block_rows // chunk_rows

    @pl.loop(0, n_chunks)
    def _chunks(s):
        r0 = pl.multiple_of(s * chunk_rows, chunk_rows)
        x = x_ref[pl.ds(r0, chunk_rows), :].astype(jnp.float32)
        t = t_ref[pl.ds(r0, chunk_rows), :].astype(jnp.float32)

        if needs_mask:
            chunk_start = (c * blocks_per_part + i) * block_rows + s * chunk_rows
            fully_valid = chunk_start + chunk_rows <= rows

            @pl.when(fully_valid)
            def _fast():
                accumulate(x, t)

            @pl.when(jnp.logical_not(fully_valid))
            def _ragged():
                # Ragged last chunk / clamped-duplicate block: zero rows past
                # the true end of the data before any log/multiply math.
                row_ids = (jax.lax.broadcasted_iota(
                    jnp.int32, (chunk_rows, _LANE), 0) + chunk_start)
                valid = row_ids < rows
                accumulate(jnp.where(valid, x, 0.0), jnp.where(valid, t, 0.0))
        else:
            accumulate(x, t)


def _partial_sums_jax(x, t):
    """[sum(x*t), sum(x), sum(t), sum(bce)] in plain JAX (for tiny tails)."""
    x = x.astype(jnp.float32)
    t = t.astype(jnp.float32)
    log_x = jnp.maximum(jnp.log(x), -100.0)
    log_1mx = jnp.maximum(jnp.log(1.0 - x), -100.0)
    bce = -(t * log_x + (1.0 - t) * log_1mx)
    return jnp.stack([jnp.sum(x * t), jnp.sum(x), jnp.sum(t), jnp.sum(bce)])


def dice_bce_loss(inputs, targets, smooth=1.0, weight=1.0):
    """Pallas equivalent of DiceBCELoss.forward (returns a scalar f32)."""
    n = inputs.size
    xf = inputs.reshape(-1)
    tf = targets.reshape(-1)

    n_main = (n // _LANE) * _LANE       # 128-aligned prefix handled by the kernel
    rows = n_main // _LANE

    if rows == 0:
        # Tiny input: nothing for the kernel to do.
        sums = _partial_sums_jax(xf, tf)
    else:
        bytes_per_buffer, num_tc = _chip_config()

        itemsize_x = jnp.dtype(inputs.dtype).itemsize
        itemsize_t = jnp.dtype(targets.dtype).itemsize
        # Sublane granularity for the native dtypes (8 f32, 16 bf16, 32 int8).
        sub = max(8, 32 // itemsize_x, 32 // itemsize_t)

        # Bytes-per-buffer cap -> rows, for the widest input dtype.
        max_block_rows = max(
            _CHUNK_ROWS,
            bytes_per_buffer // (_LANE * max(itemsize_x, itemsize_t)))

        if rows >= _CHUNK_ROWS:
            chunk_rows = _CHUNK_ROWS
            block_rows = min(max_block_rows, _round_up(rows, chunk_rows))
        else:
            chunk_rows = _round_up(rows, sub)
            block_rows = chunk_rows

        nb = pl.cdiv(rows, block_rows)                 # total row-blocks
        num_parallel = num_tc if nb >= num_tc else 1
        bpp = pl.cdiv(nb, num_parallel)                # blocks per parallel part
        needs_mask = (num_parallel * bpp * block_rows) != rows

        if n_main < n:
            x2 = xf[:n_main].reshape(rows, _LANE)
            t2 = tf[:n_main].reshape(rows, _LANE)
        else:
            x2 = xf.reshape(rows, _LANE)
            t2 = tf.reshape(rows, _LANE)

        if num_parallel * bpp == nb:
            in_map = lambda c, i: (c * bpp + i, 0)
        else:
            # The extra step of an uneven split re-reads the last valid block;
            # its rows are >= `rows` so the in-kernel mask zeroes them out.
            in_map = lambda c, i: (jnp.minimum(c * bpp + i, nb - 1), 0)

        kernel = functools.partial(
            _dice_bce_partial_kernel,
            rows=rows,
            block_rows=block_rows,
            chunk_rows=chunk_rows,
            blocks_per_part=bpp,
            needs_mask=needs_mask,
        )

        # 2 pipeline buffers per input + double-buffered accumulator block
        # + headroom for chunk-sized f32 temporaries; capped well under the
        # v7x 64 MiB physical VMEM.
        in_buf_bytes = 2 * block_rows * _LANE * (itemsize_x + itemsize_t)
        acc_bytes = 2 * (4 * 8 * _LANE * 4)
        vmem_limit = int(min(max(in_buf_bytes + acc_bytes + (8 << 20), 32 << 20),
                             48 << 20))

        acc = pl.pallas_call(
            kernel,
            out_shape=jax.ShapeDtypeStruct((num_parallel, 4, 8, _LANE), jnp.float32),
            grid_spec=pltpu.PrefetchScalarGridSpec(
                num_scalar_prefetch=0,
                grid=(num_parallel, bpp),
                in_specs=[
                    pl.BlockSpec((block_rows, _LANE), in_map),
                    pl.BlockSpec((block_rows, _LANE), in_map),
                ],
                out_specs=pl.BlockSpec((1, 4, 8, _LANE), lambda c, i: (c, 0, 0, 0)),
            ),
            compiler_params=pltpu.CompilerParams(
                dimension_semantics=("parallel", "arbitrary"),
                vmem_limit_bytes=vmem_limit,
            ),
        )(x2, t2)

        # Tiny final reduction in plain JAX.
        sums = jnp.sum(acc, axis=(0, 2, 3))
        if n_main < n:
            # Ragged < 128-element tail (avoids a full host-side pad copy).
            sums = sums + _partial_sums_jax(xf[n_main:], tf[n_main:])

    intersection, sum_x, sum_t, bce_sum = sums[0], sums[1], sums[2], sums[3]
    dice_loss = 1.0 - (2.0 * intersection + smooth) / (sum_x + sum_t + smooth)
    bce = bce_sum / n
    return (bce + dice_loss) * weight


def _reference(inputs, targets, smooth=1.0, weight=1.0):
    x = inputs.reshape(-1).astype(jnp.float32)
    t = targets.reshape(-1).astype(jnp.float32)
    intersection = jnp.sum(x * t)
    dice = 1.0 - (2.0 * intersection + smooth) / (jnp.sum(x) + jnp.sum(t) + smooth)
    log_x = jnp.maximum(jnp.log(x), -100.0)
    log_1mx = jnp.maximum(jnp.log(1.0 - x), -100.0)
    bce = jnp.mean(-(t * log_x + (1.0 - t) * log_1mx))
    return (bce + dice) * weight


if __name__ == "__main__":
    key = jax.random.PRNGKey(0)
    k1, k2 = jax.random.split(key)

    # inputs: probabilities in (0, 1); targets: binary masks. Shape NCHW.
    shape = (2, 4, 16, 16)
    inputs = jax.nn.sigmoid(jax.random.normal(k1, shape, dtype=jnp.float32))
    targets = (jax.random.uniform(k2, shape) > 0.5).astype(jnp.float32)

    loss = jax.jit(dice_bce_loss)(inputs, targets)
    loss = jax.block_until_ready(loss)

    ref = _reference(inputs, targets, smooth=1.0, weight=1.0)
    assert jnp.allclose(loss, ref, rtol=1e-5, atol=1e-5), (loss, ref)

    print("KERNEL_OK")
</pallas_src>

<mosaic_0001>
module attributes {stable_mosaic.version = 11 : i64} {
  func.func @_dice_bce_partial_kernel(%arg0: i32, %arg1: i32, %arg2: memref<16x128xf32, #tpu.memory_space<vmem>>, %arg3: memref<16x128xf32, #tpu.memory_space<vmem>>, %arg4: memref<1x4x8x128xf32, #tpu.memory_space<vmem>>) attributes {dimension_semantics = [#tpu.dimension_semantics<parallel>, #tpu.dimension_semantics<arbitrary>], iteration_bounds = array<i64: 1, 1>, scalar_prefetch = 0 : i64, scratch_operands = 0 : i64, tpu.core_type = #tpu.core_type<tc>, window_params = [{transform_indices = @transform_0, window_bounds = array<i64: 16, 128>}, {transform_indices = @transform_1, window_bounds = array<i64: 16, 128>}, {transform_indices = @transform_2, window_bounds = array<i64: 1, 4, 8, 128>}]} {
    %c0_i32 = arith.constant 0 : i32
    %0 = arith.cmpi eq, %arg1, %c0_i32 : i32
    %1 = arith.extui %0 : i1 to i32
    %c0_i32_0 = arith.constant 0 : i32
    %2 = arith.cmpi ne, %1, %c0_i32_0 : i32
    scf.if %2 {
      %cst_40 = arith.constant 0.000000e+00 : f32
      %55 = vector.broadcast %cst_40 : f32 to vector<1x4x8x128xf32>
      %c0_41 = arith.constant 0 : index
      %c0_42 = arith.constant 0 : index
      %c0_43 = arith.constant 0 : index
      %c0_44 = arith.constant 0 : index
      %56 = vector.load %arg4[%c0_41, %c0_42, %c0_43, %c0_44] : memref<1x4x8x128xf32, #tpu.memory_space<vmem>>, vector<1x4x8x128xf32>
      tpu.vector_store %arg4[%c0_41, %c0_42, %c0_43, %c0_44], %55 {strides = array<i32>} : memref<1x4x8x128xf32, #tpu.memory_space<vmem>>, vector<1x4x8x128xf32>,
    } else {
    }
    %c0_i32_1 = arith.constant 0 : i32
    %c1_i32 = arith.constant 1 : i32
    %3 = arith.muli %c0_i32_1, %c1_i32 : i32
    %c0_i32_2 = arith.constant 0 : i32
    %4 = arith.addi %c0_i32_2, %3 : i32
    %c16_i32 = arith.constant 16 : i32
    %5 = arith.muli %4, %c16_i32 : i32
    %6 = tpu.assume_multiple %5, 16 : i32
    %7 = arith.index_cast %6 : i32 to index
    %c0 = arith.constant 0 : index
    %8 = vector.load %arg2[%7, %c0] : memref<16x128xf32, #tpu.memory_space<vmem>>, vector<16x128xf32>
    %9 = arith.index_cast %6 : i32 to index
    %c0_3 = arith.constant 0 : index
    %10 = vector.load %arg3[%9, %c0_3] : memref<16x128xf32, #tpu.memory_space<vmem>>, vector<16x128xf32>
    %11 = math.log %8 : vector<16x128xf32>
    %cst = arith.constant -1.000000e+02 : f32
    %12 = vector.broadcast %cst : f32 to vector<16x128xf32>
    %13 = arith.maximumf %11, %12 : vector<16x128xf32>
    %cst_4 = arith.constant 1.000000e+00 : f32
    %14 = vector.broadcast %cst_4 : f32 to vector<16x128xf32>
    %15 = arith.subf %14, %8 : vector<16x128xf32>
    %16 = math.log %15 : vector<16x128xf32>
    %cst_5 = arith.constant -1.000000e+02 : f32
    %17 = vector.broadcast %cst_5 : f32 to vector<16x128xf32>
    %18 = arith.maximumf %16, %17 : vector<16x128xf32>
    %c0_6 = arith.constant 0 : index
    %c0_7 = arith.constant 0 : index
    %c0_8 = arith.constant 0 : index
    %c0_9 = arith.constant 0 : index
    %19 = vector.load %arg4[%c0_6, %c0_7, %c0_8, %c0_9] : memref<1x4x8x128xf32, #tpu.memory_space<vmem>>, vector<1x1x8x128xf32>
    %20 = vector.shape_cast %19 : vector<1x1x8x128xf32> to vector<8x128xf32>
    %21 = arith.mulf %8, %10 : vector<16x128xf32>
    %22 = vector.shape_cast %21 : vector<16x128xf32> to vector<2x8x128xf32>
    %cst_10 = arith.constant dense<0.000000e+00> : vector<8x128xf32>
    %23 = vector.multi_reduction <add>, %22, %cst_10 [0] : vector<2x8x128xf32> to vector<8x128xf32>
    %24 = arith.addf %20, %23 : vector<8x128xf32>
    %c0_11 = arith.constant 0 : index
    %c0_12 = arith.constant 0 : index
    %c0_13 = arith.constant 0 : index
    %c0_14 = arith.constant 0 : index
    %25 = vector.load %arg4[%c0_11, %c0_12, %c0_13, %c0_14] : memref<1x4x8x128xf32, #tpu.memory_space<vmem>>, vector<1x1x8x128xf32>
    %26 = vector.shape_cast %25 : vector<1x1x8x128xf32> to vector<8x128xf32>
    %27 = vector.shape_cast %24 : vector<8x128xf32> to vector<1x1x8x128xf32>
    tpu.vector_store %arg4[%c0_11, %c0_12, %c0_13, %c0_14], %27 {strides = array<i32>} : memref<1x4x8x128xf32, #tpu.memory_space<vmem>>, vector<1x1x8x128xf32>,
    %c0_15 = arith.constant 0 : index
    %c1 = arith.constant 1 : index
    %c0_16 = arith.constant 0 : index
    %c0_17 = arith.constant 0 : index
    %28 = vector.load %arg4[%c0_15, %c1, %c0_16, %c0_17] : memref<1x4x8x128xf32, #tpu.memory_space<vmem>>, vector<1x1x8x128xf32>
    %29 = vector.shape_cast %28 : vector<1x1x8x128xf32> to vector<8x128xf32>
    %30 = vector.shape_cast %8 : vector<16x128xf32> to vector<2x8x128xf32>
    %cst_18 = arith.constant dense<0.000000e+00> : vector<8x128xf32>
    %31 = vector.multi_reduction <add>, %30, %cst_18 [0] : vector<2x8x128xf32> to vector<8x128xf32>
    %32 = arith.addf %29, %31 : vector<8x128xf32>
    %c0_19 = arith.constant 0 : index
    %c1_20 = arith.constant 1 : index
    %c0_21 = arith.constant 0 : index
    %c0_22 = arith.constant 0 : index
    %33 = vector.load %arg4[%c0_19, %c1_20, %c0_21, %c0_22] : memref<1x4x8x128xf32, #tpu.memory_space<vmem>>, vector<1x1x8x128xf32>
    %34 = vector.shape_cast %33 : vector<1x1x8x128xf32> to vector<8x128xf32>
    %35 = vector.shape_cast %32 : vector<8x128xf32> to vector<1x1x8x128xf32>
    tpu.vector_store %arg4[%c0_19, %c1_20, %c0_21, %c0_22], %35 {strides = array<i32>} : memref<1x4x8x128xf32, #tpu.memory_space<vmem>>, vector<1x1x8x128xf32>,
    %c0_23 = arith.constant 0 : index
    %c2 = arith.constant 2 : index
    %c0_24 = arith.constant 0 : index
    %c0_25 = arith.constant 0 : index
    %36 = vector.load %arg4[%c0_23, %c2, %c0_24, %c0_25] : memref<1x4x8x128xf32, #tpu.memory_space<vmem>>, vector<1x1x8x128xf32>
    %37 = vector.shape_cast %36 : vector<1x1x8x128xf32> to vector<8x128xf32>
    %38 = vector.shape_cast %10 : vector<16x128xf32> to vector<2x8x128xf32>
    %cst_26 = arith.constant dense<0.000000e+00> : vector<8x128xf32>
    %39 = vector.multi_reduction <add>, %38, %cst_26 [0] : vector<2x8x128xf32> to vector<8x128xf32>
    %40 = arith.addf %37, %39 : vector<8x128xf32>
    %c0_27 = arith.constant 0 : index
    %c2_28 = arith.constant 2 : index
    %c0_29 = arith.constant 0 : index
    %c0_30 = arith.constant 0 : index
    %41 = vector.load %arg4[%c0_27, %c2_28, %c0_29, %c0_30] : memref<1x4x8x128xf32, #tpu.memory_space<vmem>>, vector<1x1x8x128xf32>
    %42 = vector.shape_cast %41 : vector<1x1x8x128xf32> to vector<8x128xf32>
    %43 = vector.shape_cast %40 : vector<8x128xf32> to vector<1x1x8x128xf32>
    tpu.vector_store %arg4[%c0_27, %c2_28, %c0_29, %c0_30], %43 {strides = array<i32>} : memref<1x4x8x128xf32, #tpu.memory_space<vmem>>, vector<1x1x8x128xf32>,
    %c0_31 = arith.constant 0 : index
    %c3 = arith.constant 3 : index
    %c0_32 = arith.constant 0 : index
    %c0_33 = arith.constant 0 : index
    %44 = vector.load %arg4[%c0_31, %c3, %c0_32, %c0_33] : memref<1x4x8x128xf32, #tpu.memory_space<vmem>>, vector<1x1x8x128xf32>
    %45 = vector.shape_cast %44 : vector<1x1x8x128xf32> to vector<8x128xf32>
    %46 = arith.subf %13, %18 : vector<16x128xf32>
    %47 = arith.mulf %10, %46 : vector<16x128xf32>
    %48 = arith.addf %47, %18 : vector<16x128xf32>
    %49 = vector.shape_cast %48 : vector<16x128xf32> to vector<2x8x128xf32>
    %cst_34 = arith.constant dense<0.000000e+00> : vector<8x128xf32>
    %50 = vector.multi_reduction <add>, %49, %cst_34 [0] : vector<2x8x128xf32> to vector<8x128xf32>
    %51 = arith.subf %45, %50 : vector<8x128xf32>
    %c0_35 = arith.constant 0 : index
    %c3_36 = arith.constant 3 : index
    %c0_37 = arith.constant 0 : index
    %c0_38 = arith.constant 0 : index
    %52 = vector.load %arg4[%c0_35, %c3_36, %c0_37, %c0_38] : memref<1x4x8x128xf32, #tpu.memory_space<vmem>>, vector<1x1x8x128xf32>
    %53 = vector.shape_cast %52 : vector<1x1x8x128xf32> to vector<8x128xf32>
    %54 = vector.shape_cast %51 : vector<8x128xf32> to vector<1x1x8x128xf32>
    tpu.vector_store %arg4[%c0_35, %c3_36, %c0_37, %c0_38], %54 {strides = array<i32>} : memref<1x4x8x128xf32, #tpu.memory_space<vmem>>, vector<1x1x8x128xf32>,
    %c1_i32_39 = arith.constant 1 : i32
    return
  }
  func.func @transform_0(%arg0: i32, %arg1: i32) -> (i32, i32) {
    %c1_i32 = arith.constant 1 : i32
    %0 = arith.muli %arg0, %c1_i32 : i32
    %1 = arith.addi %0, %arg1 : i32
    %c0_i32 = arith.constant 0 : i32
    %c0_i32_0 = arith.constant 0 : i32
    return %1, %c0_i32 : i32, i32
  }
  func.func @transform_1(%arg0: i32, %arg1: i32) -> (i32, i32) {
    %c1_i32 = arith.constant 1 : i32
    %0 = arith.muli %arg0, %c1_i32 : i32
    %1 = arith.addi %0, %arg1 : i32
    %c0_i32 = arith.constant 0 : i32
    %c0_i32_0 = arith.constant 0 : i32
    return %1, %c0_i32 : i32, i32
  }
  func.func @transform_2(%arg0: i32, %arg1: i32) -> (i32, i32, i32, i32) {
    %c0_i32 = arith.constant 0 : i32
    %c0_i32_0 = arith.constant 0 : i32
    %c0_i32_1 = arith.constant 0 : i32
    %c0_i32_2 = arith.constant 0 : i32
    return %arg0, %c0_i32, %c0_i32_0, %c0_i32_1 : i32, i32, i32, i32
  }
}

</mosaic_0001>

<llo_original>
// kernel: dice_bce_loss.1
$region0: #{dice_bce_loss.1}
  #allocation0 [shape = 'u32[]', space=smem, size = 0x4, offset = 0x4, fixed_abs, tag = 'smem constant byte address 0x4 - core index']
  #allocation1 [shape = 'u32[72,128]{1,0:T(1,128)}', space=vmem, size = 0x9000, scoped, tag = 'internal scratch']
  %s0 = inlined_call_operand.vmem [shape: f32[16,128], index: 0, kind: input, shape index: {}]
  %s1 = inlined_call_operand.vmem [shape: f32[16,128], index: 1, kind: input, shape index: {}]
  %s2 = inlined_call_operand.vmem [shape: f32[1,4,8,128], index: 2, kind: output, shape index: {}]
  %s3 = sld [smem:[#allocation0]]
  $region22: #{dice_bce_loss.1} parent=0
    _
  %s5 = ssub.s32 1, %s3
  %s6 = scalar_select 0, %s5, %s3
  // Predicated region
  $region2: #{dice_bce_loss.1} parent=0 // pred_check
    _
  $region3: #{dice_bce_loss.1} parent=0 // pred_check_branch
    %8 = sbr.rel (0) target = $region5
  $region4: #{dice_bce_loss.1} parent=0 // pred_region
    %s9 = sadd.s32 0, 0
    %s10 = smul.u32 2, %s9
    %p11 = scmp.lt.s32.totalorder %s10, 1
    %s12 = scalar_select %p11, %s10, 1
    %s13 = smul.addr %s12, 8
    %s14 = scalar_lea.vmem %s0, %s13
    %s15 = sadd.s32 0, 0
    %s16 = smul.u32 2, %s15
  $region5: #{dice_bce_loss.1} parent=0 // pred_fallthru
    _
  // Predicated region
  $region6: #{dice_bce_loss.1} parent=0 // pred_check
    _
  $region7: #{dice_bce_loss.1} parent=0 // pred_check_branch
    %18 = sbr.rel (0) target = $region9
  $region8: #{dice_bce_loss.1} parent=0 // pred_region
    %s19 = sadd.s32 0, 0
    %s20 = smul.u32 2, %s19
    %p21 = scmp.lt.s32.totalorder %s20, 1
    %s22 = scalar_select %p21, %s20, 1
    %s23 = smul.addr %s22, 8
    %s24 = scalar_lea.vmem %s1, %s23
    %s25 = sadd.s32 0, 0
    %s26 = smul.u32 2, %s25
  $region9: #{dice_bce_loss.1} parent=0 // pred_fallthru
    _
  %s27 = sadd.s32 0, 0
  %s28 = smul.u32 2, %s27
  %p29 = scmp.lt.s32.totalorder %s28, 1
  %s30 = scalar_select %p29, %s28, 1
  %s31 = smul.addr %s30, 8
  %s32 = scalar_lea.vmem %s0, %s31
  %s33 = sadd.s32 0, 0
  %s34 = smul.u32 2, %s33
  %p35 = scmp.lt.s32.totalorder %s34, 1
  %s36 = scalar_select %p35, %s34, 1
  %s37 = smul.addr %s36, 8
  %s38 = scalar_lea.vmem %s1, %s37
  %s39 = sadd.s32 0, 0
  %s40 = smul.u32 2, %s39
  %p41 = scmp.lt.s32.totalorder %s40, 1
  %s42 = scalar_select %p41, %s40, 1
  %s43 = smul.addr %s42, 8
  %s44 = scalar_lea.vmem %s0, %s43
  %s45 = sadd.s32 0, 0
  %s46 = smul.u32 2, %s45
  %s47 = sadd.s32 0, 0
  %s48 = smul.u32 2, %s47
  %p49 = scmp.lt.s32.totalorder %s48, 1
  %s50 = scalar_select %p49, %s48, 1
  %s51 = smul.addr %s50, 8
  %s52 = scalar_lea.vmem %s1, %s51
  %s53 = sadd.s32 0, 0
  %s54 = smul.u32 2, %s53
  %p55 = scmp.eq.s32.totalorder 0, 0
  // Predicated region
  $region10: #{dice_bce_loss.1} parent=0 // pred_check
    %p56 = pneg %p55
  $region11: #{dice_bce_loss.1} parent=0 // pred_check_branch
    %58 = sbr.rel (%p56) target = $region13
  $region12: #{dice_bce_loss.1} parent=0 // pred_region
    %59 = vst [vmem:[%s2] sm:$0xff] 0.0
    %60 = vst [vmem:[%s2 + $0x8] sm:$0xff] 0.0
    %61 = vst [vmem:[%s2 + $0x10] sm:$0xff] 0.0
    %62 = vst [vmem:[%s2 + $0x18] sm:$0xff] 0.0
  $region13: #{dice_bce_loss.1} parent=0 // pred_fallthru
    _
  %v63 = vld [vmem:[%s44] sm:$0xff]
  %v64 = vld [vmem:[%s44 + $0x8] sm:$0xff]
  %v65 = vld [vmem:[%s52] sm:$0xff]
  %v66 = vld [vmem:[%s52 + $0x8] sm:$0xff]
  %v67 = vlog2.pop %v63
  %v68 = vmul.f32 %v67, 0.6931472
  %v69 = vlog2.pop %v64
  %v70 = vmul.f32 %v69, 0.6931472
  %v71 = vmax.f32 %v68, -100.0
  %v72 = vmax.f32 %v70, -100.0
  %v73 = vsub.f32 1.0, %v63
  %v74 = vsub.f32 1.0, %v64
  %v75 = vlog2.pop %v73
  %v76 = vmul.f32 %v75, 0.6931472
  %v77 = vlog2.pop %v74
  %v78 = vmul.f32 %v77, 0.6931472
  %v79 = vmax.f32 %v76, -100.0
  %v80 = vmax.f32 %v78, -100.0
  %v81 = vld [vmem:[%s2] sm:$0xff]
  %v82 = vmul.f32 %v63, %v65
  %v83 = vmul.f32 %v64, %v66
  %v84 = vadd.f32 %v82, %v83
  %v85 = vadd.f32 %v81, %v84
  %86 = vst [vmem:[%s2] sm:$0xff] %v85
  %s87 = scalar_lea.vmem %s2, 8
  %v88 = vld [vmem:[%s87] sm:$0xff]
  %v89 = vadd.f32 %v63, %v64
  %v90 = vadd.f32 %v88, %v89
  %91 = vst [vmem:[%s87] sm:$0xff] %v90
  %s92 = scalar_lea.vmem %s2, 16
  %v93 = vld [vmem:[%s92] sm:$0xff]
  %v94 = vadd.f32 %v65, %v66
  %v95 = vadd.f32 %v93, %v94
  %96 = vst [vmem:[%s92] sm:$0xff] %v95
  %s97 = scalar_lea.vmem %s2, 24
  %v98 = vld [vmem:[%s97] sm:$0xff]
  %v99 = vsub.f32 %v71, %v79
  %v100 = vsub.f32 %v72, %v80
  %v101 = vmul.f32 %v65, %v99
  %v102 = vmul.f32 %v66, %v100
  %v103 = vadd.f32 %v101, %v79
  %v104 = vadd.f32 %v102, %v80
  %v105 = vadd.f32 %v103, %v104
  %v106 = vsub.f32 %v98, %v105
  %107 = vst [vmem:[%s97] sm:$0xff] %v106
  // Predicated region
  $region14: #{dice_bce_loss.1} parent=0 // pred_check
    _
  $region15: #{dice_bce_loss.1} parent=0 // pred_check_branch
    %109 = sbr.rel (0) target = $region17
  $region16: #{dice_bce_loss.1} parent=0 // pred_region
    _
  $region17: #{dice_bce_loss.1} parent=0 // pred_fallthru
    _
  // Predicated region
  $region18: #{dice_bce_loss.1} parent=0 // pred_check
    _
  $region19: #{dice_bce_loss.1} parent=0 // pred_check_branch
    %111 = sbr.rel (0) target = $region21
  $region20: #{dice_bce_loss.1} parent=0 // pred_region
    _
  $region21: #{dice_bce_loss.1} parent=0 // pred_fallthru
    _

</llo_original>
